<compile_context>
chip_gen: v7x
topology: tpu7x:2x2x1
jax: 0.10.0
libtpu: 0.0.40
codegen_flags: <defaults>
</compile_context>

<pallas_src>
import functools

import jax
import jax.numpy as jnp
from jax.experimental import pallas as pl
from jax.experimental.pallas import tpu as pltpu

D = 512  # fixed by self.v = nn.Linear(512, 1)


def _att_context_kernel(x_ref, f_ref, vw_ref, vb_ref, o_ref, *, approx):
    # x_ref : (TB, 1, D)  VMEM   -- hidden states for TB batch rows
    # f_ref : (TB, L, D)  VMEM   -- image features for TB batch rows
    # vw_ref: (1, D)      VMEM   -- Linear(512, 1) weight
    # vb_ref: (1, 1)      SMEM   -- Linear(512, 1) bias (scalar)
    # o_ref : (TB, 1, D)  VMEM   -- context vectors
    x = x_ref[...]                     # (TB, 1, D)
    f = f_ref[...]                     # (TB, L, D)
    vw = vw_ref[...]                   # (1, D)

    # tanh(x + y) with broadcast over L, then the Linear(512 -> 1) projection.
    t = jnp.tanh(f + x)                                            # (TB, L, D)
    # D-reduction (lane axis). Kernel is HBM-bound, so the XLU reduce is fine;
    # routing it to the MXU (N=1 matmul) would not move the roofline.
    e = jnp.sum(t * vw, axis=-1, keepdims=True) + vb_ref[0, 0]     # (TB, L, 1)

    # softmax over L (sublane axis)
    e = e - jnp.max(e, axis=1, keepdims=True)
    p = jnp.exp(e)
    denom = jnp.sum(p, axis=1, keepdims=True)                      # (TB, 1, 1)
    if approx:
        inv = pl.reciprocal(denom, approx=True)   # EUP slot, keeps VALU free
    else:
        inv = 1.0 / denom
    alpha = p * inv                                                # (TB, L, 1)

    # context = sum_l alpha[l] * f[l, :]
    o_ref[...] = jnp.sum(alpha * f, axis=1, keepdims=True)         # (TB, 1, D)


def _choose_tb(batch, seq_len, feat, itemsize=4,
               tile_budget_bytes=6 * 1024 * 1024):
    """Batch rows per grid step.

    Keeps the double-buffered imgsfeats window <= ~2 * tile_budget (fits the
    scoped-VMEM limits of v5e/v6e/v7x) while keeping >= 2 grid steps when
    possible so the parallel batch axis can be sharded across both v7x TCs.
    """
    per_row = seq_len * feat * itemsize
    tb = max(1, min(batch, tile_budget_bytes // per_row))
    if tb >= batch and batch >= 2:
        tb = -(-batch // 2)            # ceil(B/2): keep the grid >= 2 steps
    return tb


def attention_layer_context(x, imgsfeats, v_w, v_b, *, approx_softmax=True):
    """x: (B, D) f32, imgsfeats: (B, L, D) f32, v_w: (1, D), v_b: scalar."""
    B, L, Df = imgsfeats.shape
    assert x.shape == (B, Df) and Df == D

    tb = _choose_tb(B, L, Df)
    grid_b = -(-B // tb)               # ceil(B / tb); last block may be partial

    x3 = x.reshape(B, 1, Df)           # metadata-only reshape, no HBM copy
    vb = jnp.asarray(v_b, jnp.float32).reshape(1, 1)

    kernel = functools.partial(_att_context_kernel, approx=approx_softmax)

    out = pl.pallas_call(
        kernel,
        out_shape=jax.ShapeDtypeStruct((B, 1, Df), x.dtype),
        grid_spec=pltpu.PrefetchScalarGridSpec(
            num_scalar_prefetch=0,
            grid=(grid_b,),
            in_specs=[
                pl.BlockSpec((tb, 1, Df), lambda b: (b, 0, 0)),
                pl.BlockSpec((tb, L, Df), lambda b: (b, 0, 0)),
                pl.BlockSpec((1, Df), lambda b: (0, 0)),
                pl.BlockSpec((1, 1), lambda b: (0, 0),
                             memory_space=pltpu.SMEM),
            ],
            out_specs=pl.BlockSpec((tb, 1, Df), lambda b: (b, 0, 0)),
        ),
        compiler_params=pltpu.CompilerParams(
            dimension_semantics=("parallel",),
            # 2x (<=6 MiB) imgsfeats buffers + small x/out buffers fit easily;
            # 48 MiB leaves headroom below v7x's 64 MiB physical VMEM and
            # exceeds the 16/32 MiB default scoped limits on v5e/v6e.
            vmem_limit_bytes=48 * 1024 * 1024,
        ),
    )(x3, imgsfeats, v_w, vb)
    return out[:, 0, :]


def _reference(x, imgsfeats, v_w, v_b):
    # pure-JAX mirror of the PyTorch forward
    y = jnp.transpose(imgsfeats, (0, 2, 1))          # (B, D, L)
    att = jnp.tanh(x[:, :, None] + y)                # (B, D, L)
    att = jnp.transpose(att, (0, 2, 1))              # (B, L, D)
    e = jnp.einsum("bld,d->bl", att, v_w[0]) + v_b   # (B, L)
    alpha = jax.nn.softmax(e, axis=-1)               # (B, L)
    context = jnp.sum(y * alpha[:, None, :], axis=2)  # (B, D)
    return context


if __name__ == "__main__":
    key = jax.random.PRNGKey(0)
    k_data, k_w, k_b = jax.random.split(key, 3)

    # Deterministic init matching nn.Linear(512, 1) default (uniform +/- 1/sqrt(512))
    bound = 1.0 / (D ** 0.5)
    v_w = jax.random.uniform(k_w, (1, D), jnp.float32, -bound, bound)
    v_b = jax.random.uniform(k_b, (), jnp.float32, -bound, bound)

    # (B=2, L=8): even batch, grid of 2. (B=3, L=8): exercises the partial
    # last block (grid=2, tb=2, last block half out-of-bounds).
    for B, L in ((2, 8), (3, 8)):
        kx, kf = jax.random.split(jax.random.fold_in(k_data, B))
        x = jax.random.normal(kx, (B, D), dtype=jnp.float32)
        imgsfeats = jax.random.normal(kf, (B, L, D), dtype=jnp.float32)

        ref = _reference(x, imgsfeats, v_w, v_b)

        # Exact-division path: tight parity with the reference.
        out_exact = attention_layer_context(x, imgsfeats, v_w, v_b,
                                            approx_softmax=False)
        out_exact = jax.block_until_ready(out_exact)
        assert out_exact.shape == (B, D)
        assert jnp.allclose(out_exact, ref, atol=1e-5, rtol=1e-5), \
            "mismatch vs reference (exact path)"

        # Default EUP approx-reciprocal path: small extra tolerance.
        out = attention_layer_context(x, imgsfeats, v_w, v_b)
        out = jax.block_until_ready(out)
        assert out.shape == (B, D)
        assert jnp.allclose(out, ref, atol=2e-2, rtol=2e-2), \
            "mismatch vs reference (approx path)"

    print("KERNEL_OK")
</pallas_src>

<mosaic_0001>
module attributes {stable_mosaic.version = 11 : i64} {
  func.func @_att_context_kernel(%arg0: i32, %arg1: memref<1x1x512xf32, #tpu.memory_space<vmem>>, %arg2: memref<1x8x512xf32, #tpu.memory_space<vmem>>, %arg3: memref<1x512xf32, #tpu.memory_space<vmem>>, %arg4: memref<1x1xf32, #tpu.memory_space<smem>>, %arg5: memref<1x1x512xf32, #tpu.memory_space<vmem>>) attributes {dimension_semantics = [#tpu.dimension_semantics<parallel>], iteration_bounds = array<i64: 2>, scalar_prefetch = 0 : i64, scratch_operands = 0 : i64, tpu.core_type = #tpu.core_type<tc>, window_params = [{transform_indices = @transform_0, window_bounds = array<i64: 1, 1, 512>}, {transform_indices = @transform_1, window_bounds = array<i64: 1, 8, 512>}, {pipeline_mode = #tpu.pipeline_mode<synchronous>, transform_indices = @transform_2, window_bounds = array<i64: 1, 512>}, {transform_indices = @transform_3, window_bounds = array<i64: 1, 1>}, {transform_indices = @transform_4, window_bounds = array<i64: 1, 1, 512>}]} {
    %c0 = arith.constant 0 : index
    %c0_0 = arith.constant 0 : index
    %c0_1 = arith.constant 0 : index
    %0 = vector.load %arg1[%c0, %c0_0, %c0_1] : memref<1x1x512xf32, #tpu.memory_space<vmem>>, vector<1x1x512xf32>
    %c0_2 = arith.constant 0 : index
    %c0_3 = arith.constant 0 : index
    %c0_4 = arith.constant 0 : index
    %1 = vector.load %arg2[%c0_2, %c0_3, %c0_4] : memref<1x8x512xf32, #tpu.memory_space<vmem>>, vector<1x8x512xf32>
    %c0_5 = arith.constant 0 : index
    %c0_6 = arith.constant 0 : index
    %2 = vector.load %arg3[%c0_5, %c0_6] : memref<1x512xf32, #tpu.memory_space<vmem>>, vector<1x512xf32>
    %3 = vector.broadcast %0 : vector<1x1x512xf32> to vector<1x8x512xf32>
    %4 = arith.addf %1, %3 : vector<1x8x512xf32>
    %5 = math.tanh %4 : vector<1x8x512xf32>
    %6 = vector.shape_cast %2 : vector<1x512xf32> to vector<1x1x512xf32>
    %7 = vector.broadcast %6 : vector<1x1x512xf32> to vector<1x8x512xf32>
    %8 = arith.mulf %5, %7 : vector<1x8x512xf32>
    %cst = arith.constant dense<0.000000e+00> : vector<1x8xf32>
    %9 = vector.multi_reduction <add>, %8, %cst [2] : vector<1x8x512xf32> to vector<1x8xf32>
    %10 = vector.shape_cast %9 : vector<1x8xf32> to vector<1x8x1xf32>
    %c0_7 = arith.constant 0 : index
    %c0_8 = arith.constant 0 : index
    %11 = memref.load %arg4[%c0_7, %c0_8] : memref<1x1xf32, #tpu.memory_space<smem>>
    %12 = vector.broadcast %11 : f32 to vector<1x8x1xf32>
    %13 = arith.addf %10, %12 : vector<1x8x1xf32>
    %cst_9 = arith.constant dense<0xFF800000> : vector<1x1xf32>
    %14 = vector.multi_reduction <maximumf>, %13, %cst_9 [1] : vector<1x8x1xf32> to vector<1x1xf32>
    %15 = vector.shape_cast %14 : vector<1x1xf32> to vector<1x1x1xf32>
    %16 = vector.broadcast %15 : vector<1x1x1xf32> to vector<1x8x1xf32>
    %17 = arith.subf %13, %16 : vector<1x8x1xf32>
    %18 = math.exp %17 : vector<1x8x1xf32>
    %cst_10 = arith.constant dense<0.000000e+00> : vector<1x1xf32>
    %19 = vector.multi_reduction <add>, %18, %cst_10 [1] : vector<1x8x1xf32> to vector<1x1xf32>
    %20 = vector.shape_cast %19 : vector<1x1xf32> to vector<1x1x1xf32>
    %cst_11 = arith.constant 1.000000e+00 : f32
    %21 = vector.broadcast %cst_11 : f32 to vector<1x1x1xf32>
    %22 = arith.divf %21, %20 : vector<1x1x1xf32>
    %23 = vector.broadcast %22 : vector<1x1x1xf32> to vector<1x8x1xf32>
    %24 = arith.mulf %18, %23 : vector<1x8x1xf32>
    %25 = vector.broadcast %24 : vector<1x8x1xf32> to vector<1x8x512xf32>
    %26 = arith.mulf %25, %1 : vector<1x8x512xf32>
    %cst_12 = arith.constant dense<0.000000e+00> : vector<1x512xf32>
    %27 = vector.multi_reduction <add>, %26, %cst_12 [1] : vector<1x8x512xf32> to vector<1x512xf32>
    %28 = vector.shape_cast %27 : vector<1x512xf32> to vector<1x1x512xf32>
    %c0_13 = arith.constant 0 : index
    %c0_14 = arith.constant 0 : index
    %c0_15 = arith.constant 0 : index
    %29 = vector.load %arg5[%c0_13, %c0_14, %c0_15] : memref<1x1x512xf32, #tpu.memory_space<vmem>>, vector<1x1x512xf32>
    tpu.vector_store %arg5[%c0_13, %c0_14, %c0_15], %28 {strides = array<i32>} : memref<1x1x512xf32, #tpu.memory_space<vmem>>, vector<1x1x512xf32>,
    return
  }
  func.func @transform_0(%arg0: i32) -> (i32, i32, i32) {
    %c0_i32 = arith.constant 0 : i32
    %c0_i32_0 = arith.constant 0 : i32
    %c0_i32_1 = arith.constant 0 : i32
    return %arg0, %c0_i32, %c0_i32_0 : i32, i32, i32
  }
  func.func @transform_1(%arg0: i32) -> (i32, i32, i32) {
    %c0_i32 = arith.constant 0 : i32
    %c0_i32_0 = arith.constant 0 : i32
    %c0_i32_1 = arith.constant 0 : i32
    return %arg0, %c0_i32, %c0_i32_0 : i32, i32, i32
  }
  func.func @transform_2(%arg0: i32) -> (i32, i32) {
    %c0_i32 = arith.constant 0 : i32
    %c0_i32_0 = arith.constant 0 : i32
    %c0_i32_1 = arith.constant 0 : i32
    return %c0_i32, %c0_i32_0 : i32, i32
  }
  func.func @transform_3(%arg0: i32) -> (i32, i32) {
    %c0_i32 = arith.constant 0 : i32
    %c0_i32_0 = arith.constant 0 : i32
    %c0_i32_1 = arith.constant 0 : i32
    return %c0_i32, %c0_i32_0 : i32, i32
  }
  func.func @transform_4(%arg0: i32) -> (i32, i32, i32) {
    %c0_i32 = arith.constant 0 : i32
    %c0_i32_0 = arith.constant 0 : i32
    %c0_i32_1 = arith.constant 0 : i32
    return %arg0, %c0_i32, %c0_i32_0 : i32, i32, i32
  }
}

</mosaic_0001>

<llo_original>
// kernel: tpu_custom_call.1
$region0: #{tpu_custom_call.1}
  #allocation0 [shape = 'u32[]', space=smem, size = 0x4, offset = 0x4, fixed_abs, tag = 'smem constant byte address 0x4 - core index']
  #allocation1 [shape = 'u32[144,128]{1,0:T(1,128)}', space=vmem, size = 0x12000, scoped, tag = 'internal scratch']
  #allocation2 [shape = 'f32[1,1]{1,0:T(1,128)S(6)}', space=smem, size = 0x200, scoped, tag = 'scoped memory for tpu_custom_call.1']
  %s0 = inlined_call_operand.hbm [shape: f32[2,1,512], index: 0, kind: input, shape index: {}]
  %s1 = inlined_call_operand.hbm [shape: f32[2,8,512], index: 1, kind: input, shape index: {}]
  %s2 = inlined_call_operand.vmem [shape: f32[1,512], index: 2, kind: input, shape index: {}]
  %s3 = inlined_call_operand.<no memory space> [shape: f32[1,1], index: 3, kind: input, shape index: {}]
  %s4 = inlined_call_operand.hbm [shape: f32[2,1,512], index: 4, kind: output, shape index: {}]
  %s5 = sld [smem:[#allocation0]]
  $region57: #{tpu_custom_call.1} parent=0
    _
  %s7 = ssub.s32 1, %s5
  %s8 = scalar_select 0, %s7, %s5
  %9 = sst [smem:[#allocation2]] %s3
  $region1: #{tpu_custom_call.1} parent=0
    #allocation3 [shape = 'u8[4096]{0}', space=vmem, size = 0x1000, scoped, tag = 'input window, operand 0']
    #allocation4 [shape = 's32[2]{0}', space=sflag, size = 0x8, scoped, tag = 'scoped memory for tpu_custom_call.1']
    #allocation5 [shape = 's32[2]{0}', space=sflag, size = 0x8, scoped, tag = 'scoped memory for tpu_custom_call.1']
    #allocation6 [shape = 'u8[32768]{0}', space=vmem, size = 0x8000, scoped, tag = 'input window, operand 1']
    #allocation7 [shape = 's32[2]{0}', space=sflag, size = 0x8, scoped, tag = 'scoped memory for tpu_custom_call.1']
    #allocation8 [shape = 'u8[4096]{0}', space=vmem, size = 0x1000, scoped, tag = 'output window, operand 0']
    %10 = vsyncpa [#allocation4], 0
    %s11 = scalar_lea.sflag [#allocation4], 1
    %12 = vsyncpa %s11, 0
    %13 = vsyncpa [#allocation7], 0
    %s14 = scalar_lea.sflag [#allocation7], 1
    %15 = vsyncpa %s14, 0
    %16 = vsyncpa [#allocation5], 0
    %s17 = scalar_lea.sflag [#allocation5], 1
    %18 = vsyncpa %s17, 0
    loop: start=0, step=1, limit=4
    $region2: #{tpu_custom_call.1} parent=1 // loop_pre_header
      _
    $region3: #{tpu_custom_call.1} parent=1 // loop_header
      %s20 = sphi 0, %s24
      %p21 = scmp.ge.s32.totalorder %s20, 4
      %s30 = sphi 0, %s32
      %s33 = sphi 0, %s30
      %s34 = sphi 0, %s33
      %s50 = sphi 0, %s34
      %s56 = sphi 0, %s58
      %s59 = sphi 0, %s56
      %s60 = sphi 0, %s59
      %s76 = sphi 0, %s60
      %s80 = sphi 0, %s80
      %s82 = sphi 0, %s80
      %s83 = sphi 0, %s82
      %s97 = sphi 0, %s83
      %s101 = sphi 0, %s101
      %s103 = sphi 0, %s101
      %s104 = sphi 0, %s103
      %s118 = sphi 0, %s104
      %s124 = sphi 0, %s126
      %s127 = sphi 0, %s124
      %s128 = sphi 0, %s127
      %s144 = sphi 0, %s128
    $region4: #{tpu_custom_call.1} parent=1 // loop_header_branch
      %23 = sbr.rel (%p21) target = $region8
    $region5: #{tpu_custom_call.1} parent=1 // loop_body
      %s25 = ssub.s32 %s20, 1
      %s26 = ssub.s32 %s20, 2
      %s27 = sadd.s32 %s20, 1
      %s28 = ssub.s32 %s20, %s27
      %p29 = scmp.eq.s32.totalorder %s28, 0
      %s31 = sadd.s32 %s30, 1
      %s32 = scalar_select %p29, %s30, %s31
      %p35 = pneg %p29
      %p36 = scmp.eq.s32.totalorder %s20, 1
      %p37 = por %p35, %p36
      %p38 = scmp.ne.s32.totalorder %s30, %s33
      %p39 = scmp.eq.s32.totalorder %s20, 0
      %p40 = por %p38, %p39
      %p41 = scmp.ne.s32.totalorder %s30, %s33
      %p42 = scmp.eq.s32.totalorder %s25, 1
      %p43 = por %p41, %p42
      %p44 = scmp.ne.s32.totalorder %s33, %s34
      %p45 = scmp.eq.s32.totalorder %s25, 0
      %p46 = por %p44, %p45
      %p47 = scmp.ne.s32.totalorder %s33, %s34
      %p48 = scmp.eq.s32.totalorder %s26, 1
      %p49 = por %p47, %p48
      %p51 = scmp.ne.s32.totalorder %s34, %s50
      %p52 = scmp.eq.s32.totalorder %s26, 0
      %p53 = por %p51, %p52
      %s54 = ssub.s32 %s20, %s27
      %p55 = scmp.eq.s32.totalorder %s54, 0
      %s57 = sadd.s32 %s56, 1
      %s58 = scalar_select %p55, %s56, %s57
      %p61 = pneg %p55
      %p62 = scmp.eq.s32.totalorder %s20, 1
      %p63 = por %p61, %p62
      %p64 = scmp.ne.s32.totalorder %s56, %s59
      %p65 = scmp.eq.s32.totalorder %s20, 0
      %p66 = por %p64, %p65
      %p67 = scmp.ne.s32.totalorder %s56, %s59
      %p68 = scmp.eq.s32.totalorder %s25, 1
      %p69 = por %p67, %p68
      %p70 = scmp.ne.s32.totalorder %s59, %s60
      %p71 = scmp.eq.s32.totalorder %s25, 0
      %p72 = por %p70, %p71
      %p73 = scmp.ne.s32.totalorder %s59, %s60
      %p74 = scmp.eq.s32.totalorder %s26, 1
      %p75 = por %p73, %p74
      %p77 = scmp.ne.s32.totalorder %s60, %s76
      %p78 = scmp.eq.s32.totalorder %s26, 0
      %p79 = por %p77, %p78
      %s81 = sadd.s32 %s80, 1
      %p84 = scmp.eq.s32.totalorder %s20, 1
      %p85 = scmp.ne.s32.totalorder %s80, %s82
      %p86 = scmp.eq.s32.totalorder %s20, 0
      %p87 = por %p85, %p86
      %p88 = scmp.ne.s32.totalorder %s80, %s82
      %p89 = scmp.eq.s32.totalorder %s25, 1
      %p90 = por %p88, %p89
      %p91 = scmp.ne.s32.totalorder %s82, %s83
      %p92 = scmp.eq.s32.totalorder %s25, 0
      %p93 = por %p91, %p92
      %p94 = scmp.ne.s32.totalorder %s82, %s83
      %p95 = scmp.eq.s32.totalorder %s26, 1
      %p96 = por %p94, %p95
      %p98 = scmp.ne.s32.totalorder %s83, %s97
      %p99 = scmp.eq.s32.totalorder %s26, 0
      %p100 = por %p98, %p99
      %s102 = sadd.s32 %s101, 1
      %p105 = scmp.eq.s32.totalorder %s20, 1
      %p106 = scmp.ne.s32.totalorder %s101, %s103
      %p107 = scmp.eq.s32.totalorder %s20, 0
      %p108 = por %p106, %p107
      %p109 = scmp.ne.s32.totalorder %s101, %s103
      %p110 = scmp.eq.s32.totalorder %s25, 1
      %p111 = por %p109, %p110
      %p112 = scmp.ne.s32.totalorder %s103, %s104
      %p113 = scmp.eq.s32.totalorder %s25, 0
      %p114 = por %p112, %p113
      %p115 = scmp.ne.s32.totalorder %s103, %s104
      %p116 = scmp.eq.s32.totalorder %s26, 1
      %p117 = por %p115, %p116
      %p119 = scmp.ne.s32.totalorder %s104, %s118
      %p120 = scmp.eq.s32.totalorder %s26, 0
      %p121 = por %p119, %p120
      %s122 = ssub.s32 %s20, %s27
      %p123 = scmp.eq.s32.totalorder %s122, 0
      %s125 = sadd.s32 %s124, 1
      %s126 = scalar_select %p123, %s124, %s125
      %p129 = pneg %p123
      %p130 = scmp.eq.s32.totalorder %s20, 1
      %p131 = por %p129, %p130
      %p132 = scmp.ne.s32.totalorder %s124, %s127
      %p133 = scmp.eq.s32.totalorder %s20, 0
      %p134 = por %p132, %p133
      %p135 = scmp.ne.s32.totalorder %s124, %s127
      %p136 = scmp.eq.s32.totalorder %s25, 1
      %p137 = por %p135, %p136
      %p138 = scmp.ne.s32.totalorder %s127, %s128
      %p139 = scmp.eq.s32.totalorder %s25, 0
      %p140 = por %p138, %p139
      %p141 = scmp.ne.s32.totalorder %s127, %s128
      %p142 = scmp.eq.s32.totalorder %s26, 1
      %p143 = por %p141, %p142
      %p145 = scmp.ne.s32.totalorder %s128, %s144
      %p146 = scmp.eq.s32.totalorder %s26, 0
      %p147 = por %p145, %p146
      %p148 = scmp.le.s32.totalorder 1, %s20
      %p149 = scmp.lt.s32.totalorder %s20, 3
      %p150 = pnand %p148, %p149
      %p151 = pneg %p150
      // Predicated region
      $region9: #{tpu_custom_call.1} parent=5 // pred_check
        _
      $region10: #{tpu_custom_call.1} parent=5 // pred_check_branch
        %153 = sbr.rel (%p150) target = $region12
      $region11: #{tpu_custom_call.1} parent=5 // pred_region
        %s154 = ssub.s32 %s20, 1
        // Predicated region
        $region13: #{tpu_custom_call.1} parent=11 // pred_check
          %p155 = pneg %p93
        $region14: #{tpu_custom_call.1} parent=11 // pred_check_branch
          %157 = sbr.rel (%p155) target = $region16
        $region15: #{tpu_custom_call.1} parent=11 // pred_region
          _
        $region16: #{tpu_custom_call.1} parent=11 // pred_fallthru
          _
        // Predicated region
        $region17: #{tpu_custom_call.1} parent=11 // pred_check
          %p158 = pneg %p114
        $region18: #{tpu_custom_call.1} parent=11 // pred_check_branch
          %160 = sbr.rel (%p158) target = $region20
        $region19: #{tpu_custom_call.1} parent=11 // pred_region
          _
        $region20: #{tpu_custom_call.1} parent=11 // pred_fallthru
          _
      $region12: #{tpu_custom_call.1} parent=5 // pred_fallthru
        _
      %p161 = scmp.lt.s32.totalorder %s20, 2
      // Predicated region
      $region21: #{tpu_custom_call.1} parent=5 // pred_check
        %p162 = pneg %p161
      $region22: #{tpu_custom_call.1} parent=5 // pred_check_branch
        %164 = sbr.rel (%p162) target = $region24
      $region23: #{tpu_custom_call.1} parent=5 // pred_region
        // Predicated region
        $region25: #{tpu_custom_call.1} parent=23 // pred_check
          %p165 = pneg %p40
        $region26: #{tpu_custom_call.1} parent=23 // pred_check_branch
          %167 = sbr.rel (%p165) target = $region28
        $region27: #{tpu_custom_call.1} parent=23 // pred_region
          %s168 = sand.u32 %s30, 1
          %s169 = scalar_lea.sflag [#allocation4], %s168
          %s170 = sand.u32 %s30, 1
          %s171 = smul.addr %s170, 4
          %s172 = scalar_lea.vmem [#allocation3], %s171
          %s174 = ssub.s32 64, 64
          %175 = vsyncadd %s169, %s174
          %s176 = smul.addr %s20, 4
          %s177 = smul.addr %s176, 16
          %s178 = scalar_lea.hbm %s0, %s177
          %s180 = sshll.u32 %s172, 4
          %s181 = int_to_ptr.vmem [resolvable:$true] %s180
          %183 = dma.hbm_to_vmem [thread:$0]  %s178, 64, %s181, %s169
        $region28: #{tpu_custom_call.1} parent=23 // pred_fallthru
          _
        // Predicated region
        $region29: #{tpu_custom_call.1} parent=23 // pred_check
          %p184 = pneg %p66
        $region30: #{tpu_custom_call.1} parent=23 // pred_check_branch
          %186 = sbr.rel (%p184) target = $region32
        $region31: #{tpu_custom_call.1} parent=23 // pred_region
          %s187 = sand.u32 %s56, 1
          %s188 = scalar_lea.sflag [#allocation7], %s187
          %s189 = sand.u32 %s56, 1
          %s190 = smul.addr %s189, 32
          %s191 = scalar_lea.vmem [#allocation6], %s190
          %s193 = ssub.s32 512, 512
          %194 = vsyncadd %s188, %s193
          %s195 = smul.addr %s20, 4
          %s196 = smul.addr %s195, 128
          %s197 = scalar_lea.hbm %s1, %s196
          %s199 = sshll.u32 %s191, 4
          %s200 = int_to_ptr.vmem [resolvable:$true] %s199
          %202 = dma.hbm_to_vmem [thread:$0]  %s197, 512, %s200, %s188
        $region32: #{tpu_custom_call.1} parent=23 // pred_fallthru
          _
      $region24: #{tpu_custom_call.1} parent=5 // pred_fallthru
        _
      %p203 = scmp.le.s32.totalorder 1, %s20
      %p204 = scmp.lt.s32.totalorder %s20, 3
      %p205 = pnand %p203, %p204
      %p206 = pneg %p205
      // Predicated region
      $region33: #{tpu_custom_call.1} parent=5 // pred_check
        _
      $region34: #{tpu_custom_call.1} parent=5 // pred_check_branch
        %208 = sbr.rel (%p205) target = $region36
      $region35: #{tpu_custom_call.1} parent=5 // pred_region
        %s209 = ssub.s32 %s20, 1
        %s210 = sand.u32 %s33, 1
        %s211 = scalar_lea.sflag [#allocation4], %s210
        %s212 = sand.u32 %s33, 1
        %s213 = smul.addr %s212, 4
        %s214 = scalar_lea.vmem [#allocation3], %s213
        // Predicated region
        $region37: #{tpu_custom_call.1} parent=35 // pred_check
          %p215 = pneg %p46
        $region38: #{tpu_custom_call.1} parent=35 // pred_check_branch
          %217 = sbr.rel (%p215) target = $region40
        $region39: #{tpu_custom_call.1} parent=35 // pred_region
          %218 = dma.done %s211, 64
        $region40: #{tpu_custom_call.1} parent=35 // pred_fallthru
          _
        %s219 = sand.u32 %s59, 1
        %s220 = scalar_lea.sflag [#allocation7], %s219
        %s221 = sand.u32 %s59, 1
        %s222 = smul.addr %s221, 32
        %s223 = scalar_lea.vmem [#allocation6], %s222
        // Predicated region
        $region41: #{tpu_custom_call.1} parent=35 // pred_check
          %p224 = pneg %p72
        $region42: #{tpu_custom_call.1} parent=35 // pred_check_branch
          %226 = sbr.rel (%p224) target = $region44
        $region43: #{tpu_custom_call.1} parent=35 // pred_region
          %227 = dma.done %s220, 512
        $region44: #{tpu_custom_call.1} parent=35 // pred_fallthru
          _
        %s228 = sand.u32 %s33, 1
        %s229 = scalar_lea.sflag [#allocation4], %s228
        %s230 = sand.u32 %s33, 1
        %s231 = smul.addr %s230, 4
        %s232 = scalar_lea.vmem [#allocation3], %s231
        %p233 = pneg %p46
        %p234 = pneg %p43
        %s235 = sand.u32 %s59, 1
        %s236 = scalar_lea.sflag [#allocation7], %s235
        %s237 = sand.u32 %s59, 1
        %s238 = smul.addr %s237, 32
        %s239 = scalar_lea.vmem [#allocation6], %s238
        %p240 = pneg %p72
        %p241 = pneg %p69
        %p242 = pneg %p93
        %p243 = pneg %p90
        %p244 = pneg %p114
        %p245 = pneg %p111
        %p246 = pneg %p140
        %p247 = pneg %p137
        %s248 = sand.u32 %s127, 1
        %s249 = scalar_lea.sflag [#allocation5], %s248
        %s250 = sand.u32 %s127, 1
        %s251 = smul.addr %s250, 4
        %s252 = scalar_lea.vmem [#allocation8], %s251
        %v253 = vld [vmem:[%s214] sm:$0xf]
        %v254 = vld [vmem:[%s223] sm:$0xff]
        %v255 = vld [vmem:[%s223 + $0x8] sm:$0xff]
        %v256 = vld [vmem:[%s223 + $0x10] sm:$0xff]
        %v257 = vld [vmem:[%s223 + $0x18] sm:$0xff]
        %v258 = vld [vmem:[%s2] sm:$0xf]
        %v260 = vlaneseq
        %v261 = vshrl.u32 %v260, 7
        %v262 = vsub.s32 0, %v261
        %v263 = vrot.slane %v253, %v262
        %v264 = vlaneseq
        %v265 = vshrl.u32 %v264, 7
        %v266 = vsub.s32 1, %v265
        %v267 = vrot.slane %v253, %v266
        %v268 = vlaneseq
        %v269 = vshrl.u32 %v268, 7
        %v270 = vsub.s32 2, %v269
        %v271 = vrot.slane %v253, %v270
        %v272 = vlaneseq
        %v273 = vshrl.u32 %v272, 7
        %v274 = vsub.s32 3, %v273
        %v275 = vrot.slane %v253, %v274
        %v280 = vadd.f32 %v254, %v263
        %v281 = vadd.f32 %v255, %v267
        %v282 = vadd.f32 %v256, %v271
        %v283 = vadd.f32 %v257, %v275
        %v284 = vtanh.pop %v280
        %v285 = vtanh.pop %v281
        %v286 = vtanh.pop %v282
        %v287 = vtanh.pop %v283
        %v289 = vlaneseq
        %v290 = vshrl.u32 %v289, 7
        %v291 = vsub.s32 0, %v290
        %v292 = vrot.slane %v258, %v291
        %v293 = vlaneseq
        %v294 = vshrl.u32 %v293, 7
        %v295 = vsub.s32 1, %v294
        %v296 = vrot.slane %v258, %v295
        %v297 = vlaneseq
        %v298 = vshrl.u32 %v297, 7
        %v299 = vsub.s32 2, %v298
        %v300 = vrot.slane %v258, %v299
        %v301 = vlaneseq
        %v302 = vshrl.u32 %v301, 7
        %v303 = vsub.s32 3, %v302
        %v304 = vrot.slane %v258, %v303
        %v309 = vmul.f32 %v284, %v292
        %v310 = vmul.f32 %v285, %v296
        %v311 = vmul.f32 %v286, %v300
        %v312 = vmul.f32 %v287, %v304
        %v313 = vadd.f32 %v309, %v310
        %v314 = vadd.f32 %v313, %v311
        %v315 = vadd.f32 %v314, %v312
        %316 = vadd.xlane.f32.xlu0 %v315
        %v317 = vpop.xlane.xlu0 %316
        %s318 = sld [smem:[#allocation2]]
        %v319 = vstv %s318
        %v320 = vadd.f32 %v317, %v319
        %v321 = vrot.slane %v320, 4
        %v322 = vmax.f32 %v320, %v321
        %v323 = vrot.slane %v322, 2
        %v324 = vmax.f32 %v322, %v323
        %v325 = vrot.slane %v324, 1
        %v326 = vmax.f32 %v324, %v325
        %v327 = vsub.f32 %v320, %v326
        %v328 = vmul.f32 %v327, 1.442695
        %v329 = vpow.pop %v328
        %v330 = vrot.slane %v329, 4
        %v331 = vadd.f32 %v329, %v330
        %v332 = vrot.slane %v331, 2
        %v333 = vadd.f32 %v331, %v332
        %v334 = vrot.slane %v333, 1
        %v335 = vadd.f32 %v333, %v334
        %v336 = vrcp.pop %v335
        %v337 = vmul.f32 1.0, %v336
        %v338 = vmul.f32 %v329, %v337
        %v339 = vmul.f32 %v338, %v254
        %v340 = vmul.f32 %v338, %v255
        %v341 = vmul.f32 %v338, %v256
        %v342 = vmul.f32 %v338, %v257
        %v343 = vrot.slane %v339, 4
        %v344 = vadd.f32 %v339, %v343
        %v345 = vrot.slane %v344, 2
        %v346 = vadd.f32 %v344, %v345
        %v347 = vrot.slane %v346, 1
        %v348 = vadd.f32 %v346, %v347
        %v349 = vrot.slane %v340, 4
        %v350 = vadd.f32 %v340, %v349
        %v351 = vrot.slane %v350, 2
        %v352 = vadd.f32 %v350, %v351
        %v353 = vrot.slane %v352, 1
        %v354 = vadd.f32 %v352, %v353
        %v355 = vrot.slane %v341, 4
        %v356 = vadd.f32 %v341, %v355
        %v357 = vrot.slane %v356, 2
        %v358 = vadd.f32 %v356, %v357
        %v359 = vrot.slane %v358, 1
        %v360 = vadd.f32 %v358, %v359
        %v361 = vrot.slane %v342, 4
        %v362 = vadd.f32 %v342, %v361
        %v363 = vrot.slane %v362, 2
        %v364 = vadd.f32 %v362, %v363
        %v365 = vrot.slane %v364, 1
        %v366 = vadd.f32 %v364, %v365
        %v371 = vcombine.low %v348, %v354
        %v372 = vcombine.low %v360, %v366
        %v374 = vunpack.c.l.s4 1966171168
        %v375 = vunpack.c.0.s8 %v374
        %v376 = vlaneseq
        %v377 = vshrl.u32 %v376, 7
        %v378 = vsub.s32 %v375, %v377
        %v379 = vrot.slane %v371, %v378
        %v381 = vunpack.c.l.s4 1966171168
        %v382 = vunpack.c.0.s8 %v381
        %v383 = vlaneseq
        %v384 = vshrl.u32 %v383, 7
        %v385 = vsub.s32 %v382, %v384
        %v386 = vrot.slane %v372, %v385
        %v387 = vcombine.low %v379, %v386
        %v389 = vunpack.c.l.s4 1966171168
        %v390 = vunpack.c.0.s8 %v389
        %v391 = vlaneseq
        %v392 = vshrl.u32 %v391, 7
        %v393 = vsub.s32 %v390, %v392
        %v394 = vrot.slane %v387, %v393
        %v396 = vlaneseq
        %vm397 = vcmp.ge.s32.totalorder %v396, 0
        %vm398 = vcmp.lt.s32.totalorder %v396, 512
        %vm399 = vmand %vm397, %vm398
        %400 = vst.msk [vmem:[%s252] sm:$0xf] %vm399, %v394
        %s401 = sand.u32 %s127, 1
        %s402 = scalar_lea.sflag [#allocation5], %s401
        %s403 = sand.u32 %s127, 1
        %s404 = smul.addr %s403, 4
        %s405 = scalar_lea.vmem [#allocation8], %s404
        // Predicated region
        $region45: #{tpu_custom_call.1} parent=35 // pred_check
          %p406 = pneg %p137
        $region46: #{tpu_custom_call.1} parent=35 // pred_check_branch
          %408 = sbr.rel (%p406) target = $region48
        $region47: #{tpu_custom_call.1} parent=35 // pred_region
          %s410 = ssub.s32 64, 64
          %411 = vsyncadd %s402, %s410
          %s412 = smul.addr %s25, 4
          %s413 = smul.addr %s412, 16
          %s414 = scalar_lea.hbm %s4, %s413
          %s416 = sshll.u32 %s405, 4
          %s417 = int_to_ptr.vmem [resolvable:$true] %s416
          %419 = dma.vmem_to_hbm [thread:$0]  %s417, 64, %s414, %s402
        $region48: #{tpu_custom_call.1} parent=35 // pred_fallthru
          _
      $region36: #{tpu_custom_call.1} parent=5 // pred_fallthru
        _
      %p420 = scmp.le.s32.totalorder 2, %s20
      // Predicated region
      $region49: #{tpu_custom_call.1} parent=5 // pred_check
        %p421 = pneg %p420
      $region50: #{tpu_custom_call.1} parent=5 // pred_check_branch
        %423 = sbr.rel (%p421) target = $region52
      $region51: #{tpu_custom_call.1} parent=5 // pred_region
        %s424 = ssub.s32 %s20, 2
        // Predicated region
        $region53: #{tpu_custom_call.1} parent=51 // pred_check
          %p425 = pneg %p143
        $region54: #{tpu_custom_call.1} parent=51 // pred_check_branch
          %427 = sbr.rel (%p425) target = $region56
        $region55: #{tpu_custom_call.1} parent=51 // pred_region
          %s428 = sand.u32 %s128, 1
          %s429 = scalar_lea.sflag [#allocation5], %s428
          %s430 = sand.u32 %s128, 1
          %s431 = smul.addr %s430, 4
          %s432 = scalar_lea.vmem [#allocation8], %s431
          %433 = dma.done %s429, 64
        $region56: #{tpu_custom_call.1} parent=51 // pred_fallthru
          _
      $region52: #{tpu_custom_call.1} parent=5 // pred_fallthru
        _
    $region6: #{tpu_custom_call.1} parent=1 // loop_footer
      %s24 = sadd.s32 1, %s20
    $region7: #{tpu_custom_call.1} parent=1 // loop_footer_branch
      %19 = sbr.rel target = $region3
    $region8: #{tpu_custom_call.1} parent=1 // loop_exit
      _
    %434 = vsyncpa [#allocation4], 1
    %s435 = scalar_lea.sflag [#allocation4], 1
    %436 = vsyncpa %s435, 1
    %437 = vsyncpa [#allocation7], 1
    %s438 = scalar_lea.sflag [#allocation7], 1
    %439 = vsyncpa %s438, 1
    %440 = vsyncpa [#allocation5], 1
    %s441 = scalar_lea.sflag [#allocation5], 1
    %442 = vsyncpa %s441, 1

</llo_original>
